<compile_context>
chip_gen: v6e
topology: v6e:2x2x1
jax: 0.10.0
libtpu: 0.0.40
codegen_flags: <defaults>
</compile_context>

<pallas_src>
import jax
import jax.numpy as jnp
from jax.experimental import pallas as pl
from jax.experimental.pallas import tpu as pltpu


# ----------------------------------------------------------------------------
# Pallas kernel: one (TB batch rows) x (TP points) tile of SLayer.forward
# ----------------------------------------------------------------------------
def _slayer_kernel(batch_ref, mask_ref, centers_ref, sharpness_ref, out_ref):
    # batch_ref:     (D, TB, TP)  point coords, P on the 128-lane axis
    # mask_ref:      (TB, TP)     1.0 = real point, 0.0 = padding/dummy
    # centers_ref:   (D, N, 1)    N on sublanes (matches intermediate layout)
    # sharpness_ref: (D, N, 1)
    # out_ref:       (TB, N)      resident accumulator across the P grid axis

    @pl.when(pl.program_id(1) == 0)
    def _init():
        out_ref[...] = jnp.zeros_like(out_ref)

    D = batch_ref.shape[0]

    # z[b, n, p] = sum_d sharpness[n, d] * |x[b, p, d] - centers[n, d]|
    # D (point_dimension) is tiny and static -> unroll in Python.
    z = None
    for d in range(D):
        xd = batch_ref[d][:, None, :]        # (TB, 1, TP)
        cd = centers_ref[d][None, :, :]      # (1,  N, 1)
        sd = sharpness_ref[d][None, :, :]    # (1,  N, 1)
        term = sd * jnp.abs(xd - cd)         # (TB, N, TP)
        z = term if z is None else z + term

    # w[b, n, p] = exp(-z) * mask[b, p]; accumulate sum_p into the output block.
    w = jnp.exp(-z) * mask_ref[...][:, None, :]                   # (TB, N, TP)
    out_ref[...] += jnp.sum(w, axis=-1).astype(out_ref.dtype)     # lane reduce


# ----------------------------------------------------------------------------
# Wrapper: layout transforms, padding, grid/BlockSpec setup
# ----------------------------------------------------------------------------
def slayer_forward(batch, not_dummy_points, centers, sharpness,
                   *, tile_b=8, tile_p=None):
    """batch: (B, P, D), not_dummy_points: (B, P), centers/sharpness: (N, D).
    Returns squeeze of the (B, N) output (mirrors the PyTorch forward)."""
    batch = jnp.asarray(batch, jnp.float32)
    mask = jnp.asarray(not_dummy_points, jnp.float32)
    centers = jnp.asarray(centers, jnp.float32)
    sharpness = jnp.asarray(sharpness, jnp.float32)

    B, P, D = batch.shape
    N = centers.shape[0]

    if tile_p is None:
        # Larger P tiles amortize per-step overhead; keep the (TB, N, TP) f32
        # intermediate well inside scoped VMEM (also safe on v7x's 64 MiB).
        tile_p = 512 if (P >= 512 and tile_b * max(N, 8) * 512 * 4 <= 8 << 20) else 128

    b_pad = pl.cdiv(B, tile_b) * tile_b
    p_pad = pl.cdiv(P, tile_p) * tile_p

    # Lane-dense batch: (D, B_pad, P_pad) so P sits on the 128-lane axis.
    batch_t = jnp.transpose(batch, (2, 0, 1))
    batch_t = jnp.pad(batch_t, ((0, 0), (0, b_pad - B), (0, p_pad - P)))
    # Padded points/rows carry mask == 0 -> contribute exactly zero.
    mask_p = jnp.pad(mask, ((0, b_pad - B), (0, p_pad - P)))
    # Params as (D, N, 1): N on the sublane axis of the (TB, N, TP) intermediate.
    centers_t = jnp.transpose(centers, (1, 0))[:, :, None]      # (D, N, 1)
    sharpness_t = jnp.transpose(sharpness, (1, 0))[:, :, None]  # (D, N, 1)

    grid = (b_pad // tile_b, p_pad // tile_p)

    out = pl.pallas_call(
        _slayer_kernel,
        out_shape=jax.ShapeDtypeStruct((b_pad, N), jnp.float32),
        grid_spec=pltpu.PrefetchScalarGridSpec(
            num_scalar_prefetch=0,
            grid=grid,
            in_specs=[
                pl.BlockSpec((D, tile_b, tile_p), lambda i, j: (0, i, j)),
                pl.BlockSpec((tile_b, tile_p), lambda i, j: (i, j)),
                pl.BlockSpec((D, N, 1), lambda i, j: (0, 0, 0)),  # resident
                pl.BlockSpec((D, N, 1), lambda i, j: (0, 0, 0)),  # resident
            ],
            out_specs=pl.BlockSpec((tile_b, N), lambda i, j: (i, 0)),
        ),
        compiler_params=pltpu.CompilerParams(
            dimension_semantics=("parallel", "arbitrary")),
    )(batch_t, mask_p, centers_t, sharpness_t)

    out = out[:B]            # drop batch padding rows
    # PyTorch forward ends with .squeeze(); no-op for B > 1 and N > 1.
    return jnp.squeeze(out)


# ----------------------------------------------------------------------------
# prepare_batch equivalent (plain JAX/Python glue): pad multisets + dummy mask
# ----------------------------------------------------------------------------
def prepare_batch(list_of_point_sets, point_dim):
    batch_size = len(list_of_point_sets)
    max_points = max(int(t.shape[0]) for t in list_of_point_sets)
    max_points = max(max_points, 1)
    padded, mask = [], []
    for t in list_of_point_sets:
        n = int(t.shape[0])
        buf = jnp.zeros((max_points, point_dim), jnp.float32)
        if n > 0:
            buf = buf.at[:n].set(t.astype(jnp.float32))
        padded.append(buf)
        mask.append(jnp.concatenate(
            [jnp.ones((n,), jnp.float32),
             jnp.zeros((max_points - n,), jnp.float32)]))
    return jnp.stack(padded), jnp.stack(mask), max_points, batch_size


# ----------------------------------------------------------------------------
# Pure-JAX reference (mirrors the PyTorch forward) for a correctness check
# ----------------------------------------------------------------------------
def slayer_reference(batch, mask, centers, sharpness):
    diff = jnp.abs(batch[:, :, None, :] - centers[None, None, :, :])   # (B,P,N,D)
    z = jnp.sum(diff * sharpness[None, None, :, :], axis=-1)           # (B,P,N)
    w = jnp.exp(-z) * mask[:, :, None]
    return jnp.sum(w, axis=1)                                          # (B,N)


if __name__ == "__main__":
    key = jax.random.PRNGKey(0)
    k1, k2, k3 = jax.random.split(key, 3)

    n_elements = 32      # N
    point_dim = 2        # D
    # Two multisets of different cardinality (exercises the dummy-point mask).
    pts_a = jax.random.uniform(k1, (8, point_dim), jnp.float32)
    pts_b = jax.random.uniform(k2, (5, point_dim), jnp.float32)

    batch, mask, max_points, batch_size = prepare_batch([pts_a, pts_b], point_dim)

    # Deterministic parameter init (matches SLayer.__init__ defaults):
    #   centers ~ U[0,1) of shape (n_elements, point_dim), sharpness = 3 * ones.
    centers = jax.random.uniform(k3, (n_elements, point_dim), jnp.float32)
    sharpness = jnp.ones((n_elements, point_dim), jnp.float32) * 3.0

    out = slayer_forward(batch, mask, centers, sharpness)
    out = jax.block_until_ready(out)

    ref = slayer_reference(batch, mask, centers, sharpness)
    assert out.shape == (batch_size, n_elements), out.shape
    assert jnp.allclose(out, ref, atol=1e-5, rtol=1e-5), "mismatch vs reference"

    # TODO(synk): optional further tuning — scalar-prefetched per-batch point
    # counts to skip all-padding P tiles, and bf16 exp on v6e/v7x.

    print("KERNEL_OK")
</pallas_src>

<mosaic_0001>
module attributes {stable_mosaic.version = 11 : i64} {
  func.func @_slayer_kernel(%arg0: i32, %arg1: i32, %arg2: memref<2x8x128xf32, #tpu.memory_space<vmem>>, %arg3: memref<8x128xf32, #tpu.memory_space<vmem>>, %arg4: memref<2x32x1xf32, #tpu.memory_space<vmem>>, %arg5: memref<2x32x1xf32, #tpu.memory_space<vmem>>, %arg6: memref<8x32xf32, #tpu.memory_space<vmem>>) attributes {dimension_semantics = [#tpu.dimension_semantics<parallel>, #tpu.dimension_semantics<arbitrary>], iteration_bounds = array<i64: 1, 1>, scalar_prefetch = 0 : i64, scratch_operands = 0 : i64, tpu.core_type = #tpu.core_type<tc>, window_params = [{transform_indices = @transform_0, window_bounds = array<i64: 2, 8, 128>}, {transform_indices = @transform_1, window_bounds = array<i64: 8, 128>}, {pipeline_mode = #tpu.pipeline_mode<synchronous>, transform_indices = @transform_2, window_bounds = array<i64: 2, 32, 1>}, {pipeline_mode = #tpu.pipeline_mode<synchronous>, transform_indices = @transform_3, window_bounds = array<i64: 2, 32, 1>}, {transform_indices = @transform_4, window_bounds = array<i64: 8, 32>}]} {
    %c0_i32 = arith.constant 0 : i32
    %0 = arith.cmpi eq, %arg1, %c0_i32 : i32
    %1 = arith.extui %0 : i1 to i32
    %c0_i32_0 = arith.constant 0 : i32
    %2 = arith.cmpi ne, %1, %c0_i32_0 : i32
    scf.if %2 {
      %cst_24 = arith.constant 0.000000e+00 : f32
      %45 = vector.broadcast %cst_24 : f32 to vector<8x32xf32>
      %c0_25 = arith.constant 0 : index
      %c0_26 = arith.constant 0 : index
      %46 = vector.load %arg6[%c0_25, %c0_26] : memref<8x32xf32, #tpu.memory_space<vmem>>, vector<8x32xf32>
      tpu.vector_store %arg6[%c0_25, %c0_26], %45 {strides = array<i32>} : memref<8x32xf32, #tpu.memory_space<vmem>>, vector<8x32xf32>,
    } else {
    }
    %c0 = arith.constant 0 : index
    %c0_1 = arith.constant 0 : index
    %c0_2 = arith.constant 0 : index
    %3 = vector.load %arg2[%c0, %c0_1, %c0_2] : memref<2x8x128xf32, #tpu.memory_space<vmem>>, vector<1x8x128xf32>
    %4 = vector.shape_cast %3 : vector<1x8x128xf32> to vector<8x128xf32>
    %5 = vector.shape_cast %4 : vector<8x128xf32> to vector<8x1x128xf32>
    %c0_3 = arith.constant 0 : index
    %c0_4 = arith.constant 0 : index
    %c0_5 = arith.constant 0 : index
    %6 = vector.load %arg4[%c0_3, %c0_4, %c0_5] : memref<2x32x1xf32, #tpu.memory_space<vmem>>, vector<1x32x1xf32>
    %7 = vector.shape_cast %6 : vector<1x32x1xf32> to vector<32x1xf32>
    %8 = vector.shape_cast %7 : vector<32x1xf32> to vector<1x32x1xf32>
    %c0_6 = arith.constant 0 : index
    %c0_7 = arith.constant 0 : index
    %c0_8 = arith.constant 0 : index
    %9 = vector.load %arg5[%c0_6, %c0_7, %c0_8] : memref<2x32x1xf32, #tpu.memory_space<vmem>>, vector<1x32x1xf32>
    %10 = vector.shape_cast %9 : vector<1x32x1xf32> to vector<32x1xf32>
    %11 = vector.shape_cast %10 : vector<32x1xf32> to vector<1x32x1xf32>
    %12 = vector.broadcast %5 : vector<8x1x128xf32> to vector<8x32x128xf32>
    %13 = vector.broadcast %8 : vector<1x32x1xf32> to vector<8x32x128xf32>
    %14 = arith.subf %12, %13 : vector<8x32x128xf32>
    %15 = math.absf %14 : vector<8x32x128xf32>
    %16 = vector.broadcast %11 : vector<1x32x1xf32> to vector<8x32x128xf32>
    %17 = arith.mulf %16, %15 : vector<8x32x128xf32>
    %c1 = arith.constant 1 : index
    %c0_9 = arith.constant 0 : index
    %c0_10 = arith.constant 0 : index
    %18 = vector.load %arg2[%c1, %c0_9, %c0_10] : memref<2x8x128xf32, #tpu.memory_space<vmem>>, vector<1x8x128xf32>
    %19 = vector.shape_cast %18 : vector<1x8x128xf32> to vector<8x128xf32>
    %20 = vector.shape_cast %19 : vector<8x128xf32> to vector<8x1x128xf32>
    %c1_11 = arith.constant 1 : index
    %c0_12 = arith.constant 0 : index
    %c0_13 = arith.constant 0 : index
    %21 = vector.load %arg4[%c1_11, %c0_12, %c0_13] : memref<2x32x1xf32, #tpu.memory_space<vmem>>, vector<1x32x1xf32>
    %22 = vector.shape_cast %21 : vector<1x32x1xf32> to vector<32x1xf32>
    %23 = vector.shape_cast %22 : vector<32x1xf32> to vector<1x32x1xf32>
    %c1_14 = arith.constant 1 : index
    %c0_15 = arith.constant 0 : index
    %c0_16 = arith.constant 0 : index
    %24 = vector.load %arg5[%c1_14, %c0_15, %c0_16] : memref<2x32x1xf32, #tpu.memory_space<vmem>>, vector<1x32x1xf32>
    %25 = vector.shape_cast %24 : vector<1x32x1xf32> to vector<32x1xf32>
    %26 = vector.shape_cast %25 : vector<32x1xf32> to vector<1x32x1xf32>
    %27 = vector.broadcast %20 : vector<8x1x128xf32> to vector<8x32x128xf32>
    %28 = vector.broadcast %23 : vector<1x32x1xf32> to vector<8x32x128xf32>
    %29 = arith.subf %27, %28 : vector<8x32x128xf32>
    %30 = math.absf %29 : vector<8x32x128xf32>
    %31 = vector.broadcast %26 : vector<1x32x1xf32> to vector<8x32x128xf32>
    %32 = arith.mulf %31, %30 : vector<8x32x128xf32>
    %33 = arith.addf %17, %32 : vector<8x32x128xf32>
    %cst = arith.constant 0.000000e+00 : f32
    %34 = vector.broadcast %cst : f32 to vector<8x32x128xf32>
    %35 = arith.subf %34, %33 : vector<8x32x128xf32>
    %36 = math.exp %35 : vector<8x32x128xf32>
    %c0_17 = arith.constant 0 : index
    %c0_18 = arith.constant 0 : index
    %37 = vector.load %arg3[%c0_17, %c0_18] : memref<8x128xf32, #tpu.memory_space<vmem>>, vector<8x128xf32>
    %38 = vector.shape_cast %37 : vector<8x128xf32> to vector<8x1x128xf32>
    %39 = vector.broadcast %38 : vector<8x1x128xf32> to vector<8x32x128xf32>
    %40 = arith.mulf %36, %39 : vector<8x32x128xf32>
    %c0_19 = arith.constant 0 : index
    %c0_20 = arith.constant 0 : index
    %41 = vector.load %arg6[%c0_19, %c0_20] : memref<8x32xf32, #tpu.memory_space<vmem>>, vector<8x32xf32>
    %cst_21 = arith.constant dense<0.000000e+00> : vector<8x32xf32>
    %42 = vector.multi_reduction <add>, %40, %cst_21 [2] : vector<8x32x128xf32> to vector<8x32xf32>
    %43 = arith.addf %41, %42 : vector<8x32xf32>
    %c0_22 = arith.constant 0 : index
    %c0_23 = arith.constant 0 : index
    %44 = vector.load %arg6[%c0_22, %c0_23] : memref<8x32xf32, #tpu.memory_space<vmem>>, vector<8x32xf32>
    tpu.vector_store %arg6[%c0_22, %c0_23], %43 {strides = array<i32>} : memref<8x32xf32, #tpu.memory_space<vmem>>, vector<8x32xf32>,
    return
  }
  func.func @transform_0(%arg0: i32, %arg1: i32) -> (i32, i32, i32) {
    %c0_i32 = arith.constant 0 : i32
    %c0_i32_0 = arith.constant 0 : i32
    return %c0_i32, %arg0, %arg1 : i32, i32, i32
  }
  func.func @transform_1(%arg0: i32, %arg1: i32) -> (i32, i32) {
    %c0_i32 = arith.constant 0 : i32
    return %arg0, %arg1 : i32, i32
  }
  func.func @transform_2(%arg0: i32, %arg1: i32) -> (i32, i32, i32) {
    %c0_i32 = arith.constant 0 : i32
    %c0_i32_0 = arith.constant 0 : i32
    %c0_i32_1 = arith.constant 0 : i32
    %c0_i32_2 = arith.constant 0 : i32
    return %c0_i32, %c0_i32_0, %c0_i32_1 : i32, i32, i32
  }
  func.func @transform_3(%arg0: i32, %arg1: i32) -> (i32, i32, i32) {
    %c0_i32 = arith.constant 0 : i32
    %c0_i32_0 = arith.constant 0 : i32
    %c0_i32_1 = arith.constant 0 : i32
    %c0_i32_2 = arith.constant 0 : i32
    return %c0_i32, %c0_i32_0, %c0_i32_1 : i32, i32, i32
  }
  func.func @transform_4(%arg0: i32, %arg1: i32) -> (i32, i32) {
    %c0_i32 = arith.constant 0 : i32
    %c0_i32_0 = arith.constant 0 : i32
    return %arg0, %c0_i32 : i32, i32
  }
}

</mosaic_0001>

<llo_original>
// kernel: tpu_custom_call.1
$region0: #{tpu_custom_call.1}
  #allocation0 [shape = 'u32[]', space=smem, size = 0x4, offset = 0x4, fixed_abs, tag = 'smem constant byte address 0x4 - core index']
  #allocation1 [shape = 'u32[144,128]{1,0:T(1,128)}', space=vmem, size = 0x12000, scoped, tag = 'internal scratch']
  %s0 = inlined_call_operand.vmem [shape: f32[2,8,128], index: 0, kind: input, shape index: {}]
  %s1 = inlined_call_operand.vmem [shape: f32[8,128], index: 1, kind: input, shape index: {}]
  %s2 = inlined_call_operand.vmem [shape: f32[2,32,1], index: 2, kind: input, shape index: {}]
  %s3 = inlined_call_operand.vmem [shape: f32[2,32,1], index: 3, kind: input, shape index: {}]
  %s4 = inlined_call_operand.hbm [shape: f32[8,32], index: 4, kind: output, shape index: {}]
  %s5 = sld [smem:[#allocation0]]
  $region30: #{tpu_custom_call.1} parent=0
    _
  %s7 = ssub.s32 1, %s5
  %s8 = scalar_select 0, %s7, %s5
  $region1: #{tpu_custom_call.1} parent=0
    #allocation2 [shape = 'u8[4096]{0}', space=vmem, size = 0x1000, scoped, tag = 'output window, operand 0, single buffered']
    #allocation3 [shape = 's32[1]{0}', space=sflag, size = 0x4, scoped, tag = 'scoped memory for tpu_custom_call.1']
    %9 = vsyncpa [#allocation3], 0
    // Predicated region
    $region2: #{tpu_custom_call.1} parent=1 // pred_check
      _
    $region3: #{tpu_custom_call.1} parent=1 // pred_check_branch
      %11 = sbr.rel (0) target = $region5
    $region4: #{tpu_custom_call.1} parent=1 // pred_region
      _
    $region5: #{tpu_custom_call.1} parent=1 // pred_fallthru
      _
    // Predicated region
    $region6: #{tpu_custom_call.1} parent=1 // pred_check
      _
    $region7: #{tpu_custom_call.1} parent=1 // pred_check_branch
      %13 = sbr.rel (0) target = $region9
    $region8: #{tpu_custom_call.1} parent=1 // pred_region
      _
    $region9: #{tpu_custom_call.1} parent=1 // pred_fallthru
      _
    // Predicated region
    $region10: #{tpu_custom_call.1} parent=1 // pred_check
      _
    $region11: #{tpu_custom_call.1} parent=1 // pred_check_branch
      %15 = sbr.rel (0) target = $region13
    $region12: #{tpu_custom_call.1} parent=1 // pred_region
      _
    $region13: #{tpu_custom_call.1} parent=1 // pred_fallthru
      _
    // Predicated region
    $region14: #{tpu_custom_call.1} parent=1 // pred_check
      _
    $region15: #{tpu_custom_call.1} parent=1 // pred_check_branch
      %17 = sbr.rel (0) target = $region17
    $region16: #{tpu_custom_call.1} parent=1 // pred_region
      _
    $region17: #{tpu_custom_call.1} parent=1 // pred_fallthru
      _
    %p18 = scmp.eq.s32.totalorder 0, 0
    // Predicated region
    $region18: #{tpu_custom_call.1} parent=1 // pred_check
      %p19 = pneg %p18
    $region19: #{tpu_custom_call.1} parent=1 // pred_check_branch
      %21 = sbr.rel (%p19) target = $region21
    $region20: #{tpu_custom_call.1} parent=1 // pred_region
      %vm22 = vcmask 261120
      %23 = vst.msk [vmem:[#allocation2] sm:$0xff] %vm22, 0.0
    $region21: #{tpu_custom_call.1} parent=1 // pred_fallthru
      _
    %v24 = vld [vmem:[%s0] sm:$0xff]
    %v26 = vcombine.high %v24, %v24
    %v28 = vunpack.c.l.s4 1966171168
    %v29 = vunpack.c.0.s8 %v28
    %v30 = vlaneseq
    %v31 = vshrl.u32 %v30, 7
    %v32 = vsub.s32 %v29, %v31
    %v33 = vrot.slane %v24, %v32
    %v35 = vunpack.c.l.s4 1966171168
    %v36 = vunpack.c.0.s8 %v35
    %v37 = vlaneseq
    %v38 = vshrl.u32 %v37, 7
    %v39 = vsub.s32 %v36, %v38
    %v40 = vrot.slane %v26, %v39
    %v41 = vcombine.high %v33, %v33
    %v42 = vcombine.high %v40, %v40
    %v44 = vunpack.c.l.s4 1966171168
    %v45 = vunpack.c.0.s8 %v44
    %v46 = vlaneseq
    %v47 = vshrl.u32 %v46, 7
    %v48 = vsub.s32 %v45, %v47
    %v49 = vrot.slane %v33, %v48
    %v51 = vunpack.c.l.s4 1966171168
    %v52 = vunpack.c.0.s8 %v51
    %v53 = vlaneseq
    %v54 = vshrl.u32 %v53, 7
    %v55 = vsub.s32 %v52, %v54
    %v56 = vrot.slane %v40, %v55
    %v58 = vunpack.c.l.s4 1966171168
    %v59 = vunpack.c.0.s8 %v58
    %v60 = vlaneseq
    %v61 = vshrl.u32 %v60, 7
    %v62 = vsub.s32 %v59, %v61
    %v63 = vrot.slane %v41, %v62
    %v65 = vunpack.c.l.s4 1966171168
    %v66 = vunpack.c.0.s8 %v65
    %v67 = vlaneseq
    %v68 = vshrl.u32 %v67, 7
    %v69 = vsub.s32 %v66, %v68
    %v70 = vrot.slane %v42, %v69
    %v71 = vcombine.high %v49, %v49
    %v72 = vcombine.high %v56, %v56
    %v73 = vcombine.high %v63, %v63
    %v74 = vcombine.high %v70, %v70
    %v75 = vld [vmem:[%s2] sm:$0xff]
    %v76 = vld [vmem:[%s2 + $0x8] sm:$0xff]
    %v77 = vld [vmem:[%s2 + $0x10] sm:$0xff]
    %v78 = vld [vmem:[%s2 + $0x18] sm:$0xff]
    %v79 = vld [vmem:[%s3] sm:$0xff]
    %v80 = vld [vmem:[%s3 + $0x8] sm:$0xff]
    %v81 = vld [vmem:[%s3 + $0x10] sm:$0xff]
    %v82 = vld [vmem:[%s3 + $0x18] sm:$0xff]
    %v83 = vlaneseq
    %v84 = vshrl.u32 %v83, 7
    %v85 = vsub.s32 0, %v84
    %v86 = vrot.slane %v49, %v85
    %v87 = vlaneseq
    %v88 = vshrl.u32 %v87, 7
    %v89 = vsub.s32 0, %v88
    %v90 = vrot.slane %v63, %v89
    %v91 = vlaneseq
    %v92 = vshrl.u32 %v91, 7
    %v93 = vsub.s32 0, %v92
    %v94 = vrot.slane %v71, %v93
    %v95 = vlaneseq
    %v96 = vshrl.u32 %v95, 7
    %v97 = vsub.s32 0, %v96
    %v98 = vrot.slane %v73, %v97
    %v99 = vlaneseq
    %v100 = vshrl.u32 %v99, 7
    %v101 = vsub.s32 0, %v100
    %v102 = vrot.slane %v56, %v101
    %v103 = vlaneseq
    %v104 = vshrl.u32 %v103, 7
    %v105 = vsub.s32 0, %v104
    %v106 = vrot.slane %v70, %v105
    %v107 = vlaneseq
    %v108 = vshrl.u32 %v107, 7
    %v109 = vsub.s32 0, %v108
    %v110 = vrot.slane %v72, %v109
    %v111 = vlaneseq
    %v112 = vshrl.u32 %v111, 7
    %v113 = vsub.s32 0, %v112
    %v114 = vrot.slane %v74, %v113
    %124 = vset.pattern.permute.xlu0 0
    %125 = vperm.xlu0 %124, %v75
    %v126 = vpop.permute.xlu0 %125
    %129 = vset.pattern.permute.xlu0 0
    %130 = vperm.xlu0 %129, %v76
    %v131 = vpop.permute.xlu0 %130
    %134 = vset.pattern.permute.xlu0 0
    %135 = vperm.xlu0 %134, %v77
    %v136 = vpop.permute.xlu0 %135
    %139 = vset.pattern.permute.xlu0 0
    %140 = vperm.xlu0 %139, %v78
    %v141 = vpop.permute.xlu0 %140
    %v143 = vsub.f32 %v86, %v126
    %v144 = vsub.f32 %v86, %v131
    %v145 = vsub.f32 %v86, %v136
    %v146 = vsub.f32 %v86, %v141
    %v147 = vsub.f32 %v90, %v126
    %v148 = vsub.f32 %v90, %v131
    %v149 = vsub.f32 %v90, %v136
    %v150 = vsub.f32 %v90, %v141
    %v151 = vsub.f32 %v94, %v126
    %v152 = vsub.f32 %v94, %v131
    %v153 = vsub.f32 %v94, %v136
    %v154 = vsub.f32 %v94, %v141
    %v155 = vsub.f32 %v98, %v126
    %v156 = vsub.f32 %v98, %v131
    %v157 = vsub.f32 %v98, %v136
    %v158 = vsub.f32 %v98, %v141
    %v159 = vsub.f32 %v102, %v126
    %v160 = vsub.f32 %v102, %v131
    %v161 = vsub.f32 %v102, %v136
    %v162 = vsub.f32 %v102, %v141
    %v163 = vsub.f32 %v106, %v126
    %v164 = vsub.f32 %v106, %v131
    %v165 = vsub.f32 %v106, %v136
    %v166 = vsub.f32 %v106, %v141
    %v167 = vsub.f32 %v110, %v126
    %v168 = vsub.f32 %v110, %v131
    %v169 = vsub.f32 %v110, %v136
    %v170 = vsub.f32 %v110, %v141
    %v171 = vsub.f32 %v114, %v126
    %v172 = vsub.f32 %v114, %v131
    %v173 = vsub.f32 %v114, %v136
    %v174 = vsub.f32 %v114, %v141
    %v175 = vand.u32 2147483647, %v143
    %v176 = vand.u32 2147483647, %v144
    %v177 = vand.u32 2147483647, %v145
    %v178 = vand.u32 2147483647, %v146
    %v179 = vand.u32 2147483647, %v147
    %v180 = vand.u32 2147483647, %v148
    %v181 = vand.u32 2147483647, %v149
    %v182 = vand.u32 2147483647, %v150
    %v183 = vand.u32 2147483647, %v151
    %v184 = vand.u32 2147483647, %v152
    %v185 = vand.u32 2147483647, %v153
    %v186 = vand.u32 2147483647, %v154
    %v187 = vand.u32 2147483647, %v155
    %v188 = vand.u32 2147483647, %v156
    %v189 = vand.u32 2147483647, %v157
    %v190 = vand.u32 2147483647, %v158
    %v191 = vand.u32 2147483647, %v159
    %v192 = vand.u32 2147483647, %v160
    %v193 = vand.u32 2147483647, %v161
    %v194 = vand.u32 2147483647, %v162
    %v195 = vand.u32 2147483647, %v163
    %v196 = vand.u32 2147483647, %v164
    %v197 = vand.u32 2147483647, %v165
    %v198 = vand.u32 2147483647, %v166
    %v199 = vand.u32 2147483647, %v167
    %v200 = vand.u32 2147483647, %v168
    %v201 = vand.u32 2147483647, %v169
    %v202 = vand.u32 2147483647, %v170
    %v203 = vand.u32 2147483647, %v171
    %v204 = vand.u32 2147483647, %v172
    %v205 = vand.u32 2147483647, %v173
    %v206 = vand.u32 2147483647, %v174
    %208 = vset.pattern.permute.xlu0 0
    %209 = vperm.xlu0 %208, %v79
    %v210 = vpop.permute.xlu0 %209
    %213 = vset.pattern.permute.xlu0 0
    %214 = vperm.xlu0 %213, %v80
    %v215 = vpop.permute.xlu0 %214
    %218 = vset.pattern.permute.xlu0 0
    %219 = vperm.xlu0 %218, %v81
    %v220 = vpop.permute.xlu0 %219
    %223 = vset.pattern.permute.xlu0 0
    %224 = vperm.xlu0 %223, %v82
    %v225 = vpop.permute.xlu0 %224
    %v227 = vmul.f32 %v210, %v175
    %v228 = vmul.f32 %v215, %v176
    %v229 = vmul.f32 %v220, %v177
    %v230 = vmul.f32 %v225, %v178
    %v231 = vmul.f32 %v210, %v179
    %v232 = vmul.f32 %v215, %v180
    %v233 = vmul.f32 %v220, %v181
    %v234 = vmul.f32 %v225, %v182
    %v235 = vmul.f32 %v210, %v183
    %v236 = vmul.f32 %v215, %v184
    %v237 = vmul.f32 %v220, %v185
    %v238 = vmul.f32 %v225, %v186
    %v239 = vmul.f32 %v210, %v187
    %v240 = vmul.f32 %v215, %v188
    %v241 = vmul.f32 %v220, %v189
    %v242 = vmul.f32 %v225, %v190
    %v243 = vmul.f32 %v210, %v191
    %v244 = vmul.f32 %v215, %v192
    %v245 = vmul.f32 %v220, %v193
    %v246 = vmul.f32 %v225, %v194
    %v247 = vmul.f32 %v210, %v195
    %v248 = vmul.f32 %v215, %v196
    %v249 = vmul.f32 %v220, %v197
    %v250 = vmul.f32 %v225, %v198
    %v251 = vmul.f32 %v210, %v199
    %v252 = vmul.f32 %v215, %v200
    %v253 = vmul.f32 %v220, %v201
    %v254 = vmul.f32 %v225, %v202
    %v255 = vmul.f32 %v210, %v203
    %v256 = vmul.f32 %v215, %v204
    %v257 = vmul.f32 %v220, %v205
    %v258 = vmul.f32 %v225, %v206
    %s259 = scalar_lea.vmem %s0, 8
    %v260 = vld [vmem:[%s259] sm:$0xff]
    %v262 = vcombine.high %v260, %v260
    %v264 = vunpack.c.l.s4 1966171168
    %v265 = vunpack.c.0.s8 %v264
    %v266 = vlaneseq
    %v267 = vshrl.u32 %v266, 7
    %v268 = vsub.s32 %v265, %v267
    %v269 = vrot.slane %v260, %v268
    %v271 = vunpack.c.l.s4 1966171168
    %v272 = vunpack.c.0.s8 %v271
    %v273 = vlaneseq
    %v274 = vshrl.u32 %v273, 7
    %v275 = vsub.s32 %v272, %v274
    %v276 = vrot.slane %v262, %v275
    %v277 = vcombine.high %v269, %v269
    %v278 = vcombine.high %v276, %v276
    %v280 = vunpack.c.l.s4 1966171168
    %v281 = vunpack.c.0.s8 %v280
    %v282 = vlaneseq
    %v283 = vshrl.u32 %v282, 7
    %v284 = vsub.s32 %v281, %v283
    %v285 = vrot.slane %v269, %v284
    %v287 = vunpack.c.l.s4 1966171168
    %v288 = vunpack.c.0.s8 %v287
    %v289 = vlaneseq
    %v290 = vshrl.u32 %v289, 7
    %v291 = vsub.s32 %v288, %v290
    %v292 = vrot.slane %v276, %v291
    %v294 = vunpack.c.l.s4 1966171168
    %v295 = vunpack.c.0.s8 %v294
    %v296 = vlaneseq
    %v297 = vshrl.u32 %v296, 7
    %v298 = vsub.s32 %v295, %v297
    %v299 = vrot.slane %v277, %v298
    %v301 = vunpack.c.l.s4 1966171168
    %v302 = vunpack.c.0.s8 %v301
    %v303 = vlaneseq
    %v304 = vshrl.u32 %v303, 7
    %v305 = vsub.s32 %v302, %v304
    %v306 = vrot.slane %v278, %v305
    %v307 = vcombine.high %v285, %v285
    %v308 = vcombine.high %v292, %v292
    %v309 = vcombine.high %v299, %v299
    %v310 = vcombine.high %v306, %v306
    %s311 = scalar_lea.vmem %s2, 32
    %v312 = vld [vmem:[%s311] sm:$0xff]
    %v313 = vld [vmem:[%s311 + $0x8] sm:$0xff]
    %v314 = vld [vmem:[%s311 + $0x10] sm:$0xff]
    %v315 = vld [vmem:[%s311 + $0x18] sm:$0xff]
    %s316 = scalar_lea.vmem %s3, 32
    %v317 = vld [vmem:[%s316] sm:$0xff]
    %v318 = vld [vmem:[%s316 + $0x8] sm:$0xff]
    %v319 = vld [vmem:[%s316 + $0x10] sm:$0xff]
    %v320 = vld [vmem:[%s316 + $0x18] sm:$0xff]
    %v321 = vlaneseq
    %v322 = vshrl.u32 %v321, 7
    %v323 = vsub.s32 0, %v322
    %v324 = vrot.slane %v285, %v323
    %v325 = vlaneseq
    %v326 = vshrl.u32 %v325, 7
    %v327 = vsub.s32 0, %v326
    %v328 = vrot.slane %v299, %v327
    %v329 = vlaneseq
    %v330 = vshrl.u32 %v329, 7
    %v331 = vsub.s32 0, %v330
    %v332 = vrot.slane %v307, %v331
    %v333 = vlaneseq
    %v334 = vshrl.u32 %v333, 7
    %v335 = vsub.s32 0, %v334
    %v336 = vrot.slane %v309, %v335
    %v337 = vlaneseq
    %v338 = vshrl.u32 %v337, 7
    %v339 = vsub.s32 0, %v338
    %v340 = vrot.slane %v292, %v339
    %v341 = vlaneseq
    %v342 = vshrl.u32 %v341, 7
    %v343 = vsub.s32 0, %v342
    %v344 = vrot.slane %v306, %v343
    %v345 = vlaneseq
    %v346 = vshrl.u32 %v345, 7
    %v347 = vsub.s32 0, %v346
    %v348 = vrot.slane %v308, %v347
    %v349 = vlaneseq
    %v350 = vshrl.u32 %v349, 7
    %v351 = vsub.s32 0, %v350
    %v352 = vrot.slane %v310, %v351
    %362 = vset.pattern.permute.xlu0 0
    %363 = vperm.xlu0 %362, %v312
    %v364 = vpop.permute.xlu0 %363
    %367 = vset.pattern.permute.xlu0 0
    %368 = vperm.xlu0 %367, %v313
    %v369 = vpop.permute.xlu0 %368
    %372 = vset.pattern.permute.xlu0 0
    %373 = vperm.xlu0 %372, %v314
    %v374 = vpop.permute.xlu0 %373
    %377 = vset.pattern.permute.xlu0 0
    %378 = vperm.xlu0 %377, %v315
    %v379 = vpop.permute.xlu0 %378
    %v381 = vsub.f32 %v324, %v364
    %v382 = vsub.f32 %v324, %v369
    %v383 = vsub.f32 %v324, %v374
    %v384 = vsub.f32 %v324, %v379
    %v385 = vsub.f32 %v328, %v364
    %v386 = vsub.f32 %v328, %v369
    %v387 = vsub.f32 %v328, %v374
    %v388 = vsub.f32 %v328, %v379
    %v389 = vsub.f32 %v332, %v364
    %v390 = vsub.f32 %v332, %v369
    %v391 = vsub.f32 %v332, %v374
    %v392 = vsub.f32 %v332, %v379
    %v393 = vsub.f32 %v336, %v364
    %v394 = vsub.f32 %v336, %v369
    %v395 = vsub.f32 %v336, %v374
    %v396 = vsub.f32 %v336, %v379
    %v397 = vsub.f32 %v340, %v364
    %v398 = vsub.f32 %v340, %v369
    %v399 = vsub.f32 %v340, %v374
    %v400 = vsub.f32 %v340, %v379
    %v401 = vsub.f32 %v344, %v364
    %v402 = vsub.f32 %v344, %v369
    %v403 = vsub.f32 %v344, %v374
    %v404 = vsub.f32 %v344, %v379
    %v405 = vsub.f32 %v348, %v364
    %v406 = vsub.f32 %v348, %v369
    %v407 = vsub.f32 %v348, %v374
    %v408 = vsub.f32 %v348, %v379
    %v409 = vsub.f32 %v352, %v364
    %v410 = vsub.f32 %v352, %v369
    %v411 = vsub.f32 %v352, %v374
    %v412 = vsub.f32 %v352, %v379
    %v413 = vand.u32 2147483647, %v381
    %v414 = vand.u32 2147483647, %v382
    %v415 = vand.u32 2147483647, %v383
    %v416 = vand.u32 2147483647, %v384
    %v417 = vand.u32 2147483647, %v385
    %v418 = vand.u32 2147483647, %v386
    %v419 = vand.u32 2147483647, %v387
    %v420 = vand.u32 2147483647, %v388
    %v421 = vand.u32 2147483647, %v389
    %v422 = vand.u32 2147483647, %v390
    %v423 = vand.u32 2147483647, %v391
    %v424 = vand.u32 2147483647, %v392
    %v425 = vand.u32 2147483647, %v393
    %v426 = vand.u32 2147483647, %v394
    %v427 = vand.u32 2147483647, %v395
    %v428 = vand.u32 2147483647, %v396
    %v429 = vand.u32 2147483647, %v397
    %v430 = vand.u32 2147483647, %v398
    %v431 = vand.u32 2147483647, %v399
    %v432 = vand.u32 2147483647, %v400
    %v433 = vand.u32 2147483647, %v401
    %v434 = vand.u32 2147483647, %v402
    %v435 = vand.u32 2147483647, %v403
    %v436 = vand.u32 2147483647, %v404
    %v437 = vand.u32 2147483647, %v405
    %v438 = vand.u32 2147483647, %v406
    %v439 = vand.u32 2147483647, %v407
    %v440 = vand.u32 2147483647, %v408
    %v441 = vand.u32 2147483647, %v409
    %v442 = vand.u32 2147483647, %v410
    %v443 = vand.u32 2147483647, %v411
    %v444 = vand.u32 2147483647, %v412
    %446 = vset.pattern.permute.xlu0 0
    %447 = vperm.xlu0 %446, %v317
    %v448 = vpop.permute.xlu0 %447
    %451 = vset.pattern.permute.xlu0 0
    %452 = vperm.xlu0 %451, %v318
    %v453 = vpop.permute.xlu0 %452
    %456 = vset.pattern.permute.xlu0 0
    %457 = vperm.xlu0 %456, %v319
    %v458 = vpop.permute.xlu0 %457
    %461 = vset.pattern.permute.xlu0 0
    %462 = vperm.xlu0 %461, %v320
    %v463 = vpop.permute.xlu0 %462
    %v465 = vmul.f32 %v448, %v413
    %v466 = vmul.f32 %v453, %v414
    %v467 = vmul.f32 %v458, %v415
    %v468 = vmul.f32 %v463, %v416
    %v469 = vmul.f32 %v448, %v417
    %v470 = vmul.f32 %v453, %v418
    %v471 = vmul.f32 %v458, %v419
    %v472 = vmul.f32 %v463, %v420
    %v473 = vmul.f32 %v448, %v421
    %v474 = vmul.f32 %v453, %v422
    %v475 = vmul.f32 %v458, %v423
    %v476 = vmul.f32 %v463, %v424
    %v477 = vmul.f32 %v448, %v425
    %v478 = vmul.f32 %v453, %v426
    %v479 = vmul.f32 %v458, %v427
    %v480 = vmul.f32 %v463, %v428
    %v481 = vmul.f32 %v448, %v429
    %v482 = vmul.f32 %v453, %v430
    %v483 = vmul.f32 %v458, %v431
    %v484 = vmul.f32 %v463, %v432
    %v485 = vmul.f32 %v448, %v433
    %v486 = vmul.f32 %v453, %v434
    %v487 = vmul.f32 %v458, %v435
    %v488 = vmul.f32 %v463, %v436
    %v489 = vmul.f32 %v448, %v437
    %v490 = vmul.f32 %v453, %v438
    %v491 = vmul.f32 %v458, %v439
    %v492 = vmul.f32 %v463, %v440
    %v493 = vmul.f32 %v448, %v441
    %v494 = vmul.f32 %v453, %v442
    %v495 = vmul.f32 %v458, %v443
    %v496 = vmul.f32 %v463, %v444
    %v497 = vadd.f32 %v227, %v465
    %v498 = vadd.f32 %v228, %v466
    %v499 = vadd.f32 %v229, %v467
    %v500 = vadd.f32 %v230, %v468
    %v501 = vadd.f32 %v231, %v469
    %v502 = vadd.f32 %v232, %v470
    %v503 = vadd.f32 %v233, %v471
    %v504 = vadd.f32 %v234, %v472
    %v505 = vadd.f32 %v235, %v473
    %v506 = vadd.f32 %v236, %v474
    %v507 = vadd.f32 %v237, %v475
    %v508 = vadd.f32 %v238, %v476
    %v509 = vadd.f32 %v239, %v477
    %v510 = vadd.f32 %v240, %v478
    %v511 = vadd.f32 %v241, %v479
    %v512 = vadd.f32 %v242, %v480
    %v513 = vadd.f32 %v243, %v481
    %v514 = vadd.f32 %v244, %v482
    %v515 = vadd.f32 %v245, %v483
    %v516 = vadd.f32 %v246, %v484
    %v517 = vadd.f32 %v247, %v485
    %v518 = vadd.f32 %v248, %v486
    %v519 = vadd.f32 %v249, %v487
    %v520 = vadd.f32 %v250, %v488
    %v521 = vadd.f32 %v251, %v489
    %v522 = vadd.f32 %v252, %v490
    %v523 = vadd.f32 %v253, %v491
    %v524 = vadd.f32 %v254, %v492
    %v525 = vadd.f32 %v255, %v493
    %v526 = vadd.f32 %v256, %v494
    %v527 = vadd.f32 %v257, %v495
    %v528 = vadd.f32 %v258, %v496
    %v529 = vsub.f32 0.0, %v497
    %v530 = vsub.f32 0.0, %v498
    %v531 = vsub.f32 0.0, %v499
    %v532 = vsub.f32 0.0, %v500
    %v533 = vsub.f32 0.0, %v501
    %v534 = vsub.f32 0.0, %v502
    %v535 = vsub.f32 0.0, %v503
    %v536 = vsub.f32 0.0, %v504
    %v537 = vsub.f32 0.0, %v505
    %v538 = vsub.f32 0.0, %v506
    %v539 = vsub.f32 0.0, %v507
    %v540 = vsub.f32 0.0, %v508
    %v541 = vsub.f32 0.0, %v509
    %v542 = vsub.f32 0.0, %v510
    %v543 = vsub.f32 0.0, %v511
    %v544 = vsub.f32 0.0, %v512
    %v545 = vsub.f32 0.0, %v513
    %v546 = vsub.f32 0.0, %v514
    %v547 = vsub.f32 0.0, %v515
    %v548 = vsub.f32 0.0, %v516
    %v549 = vsub.f32 0.0, %v517
    %v550 = vsub.f32 0.0, %v518
    %v551 = vsub.f32 0.0, %v519
    %v552 = vsub.f32 0.0, %v520
    %v553 = vsub.f32 0.0, %v521
    %v554 = vsub.f32 0.0, %v522
    %v555 = vsub.f32 0.0, %v523
    %v556 = vsub.f32 0.0, %v524
    %v557 = vsub.f32 0.0, %v525
    %v558 = vsub.f32 0.0, %v526
    %v559 = vsub.f32 0.0, %v527
    %v560 = vsub.f32 0.0, %v528
    %v561 = vmul.f32 %v529, 1.442695
    %v562 = vpow.pop %v561
    %v563 = vmul.f32 %v530, 1.442695
    %v564 = vpow.pop %v563
    %v565 = vmul.f32 %v531, 1.442695
    %v566 = vpow.pop %v565
    %v567 = vmul.f32 %v532, 1.442695
    %v568 = vpow.pop %v567
    %v569 = vmul.f32 %v533, 1.442695
    %v570 = vpow.pop %v569
    %v571 = vmul.f32 %v534, 1.442695
    %v572 = vpow.pop %v571
    %v573 = vmul.f32 %v535, 1.442695
    %v574 = vpow.pop %v573
    %v575 = vmul.f32 %v536, 1.442695
    %v576 = vpow.pop %v575
    %v577 = vmul.f32 %v537, 1.442695
    %v578 = vpow.pop %v577
    %v579 = vmul.f32 %v538, 1.442695
    %v580 = vpow.pop %v579
    %v581 = vmul.f32 %v539, 1.442695
    %v582 = vpow.pop %v581
    %v583 = vmul.f32 %v540, 1.442695
    %v584 = vpow.pop %v583
    %v585 = vmul.f32 %v541, 1.442695
    %v586 = vpow.pop %v585
    %v587 = vmul.f32 %v542, 1.442695
    %v588 = vpow.pop %v587
    %v589 = vmul.f32 %v543, 1.442695
    %v590 = vpow.pop %v589
    %v591 = vmul.f32 %v544, 1.442695
    %v592 = vpow.pop %v591
    %v593 = vmul.f32 %v545, 1.442695
    %v594 = vpow.pop %v593
    %v595 = vmul.f32 %v546, 1.442695
    %v596 = vpow.pop %v595
    %v597 = vmul.f32 %v547, 1.442695
    %v598 = vpow.pop %v597
    %v599 = vmul.f32 %v548, 1.442695
    %v600 = vpow.pop %v599
    %v601 = vmul.f32 %v549, 1.442695
    %v602 = vpow.pop %v601
    %v603 = vmul.f32 %v550, 1.442695
    %v604 = vpow.pop %v603
    %v605 = vmul.f32 %v551, 1.442695
    %v606 = vpow.pop %v605
    %v607 = vmul.f32 %v552, 1.442695
    %v608 = vpow.pop %v607
    %v609 = vmul.f32 %v553, 1.442695
    %v610 = vpow.pop %v609
    %v611 = vmul.f32 %v554, 1.442695
    %v612 = vpow.pop %v611
    %v613 = vmul.f32 %v555, 1.442695
    %v614 = vpow.pop %v613
    %v615 = vmul.f32 %v556, 1.442695
    %v616 = vpow.pop %v615
    %v617 = vmul.f32 %v557, 1.442695
    %v618 = vpow.pop %v617
    %v619 = vmul.f32 %v558, 1.442695
    %v620 = vpow.pop %v619
    %v621 = vmul.f32 %v559, 1.442695
    %v622 = vpow.pop %v621
    %v623 = vmul.f32 %v560, 1.442695
    %v624 = vpow.pop %v623
    %v625 = vld [vmem:[%s1] sm:$0xff]
    %v627 = vcombine.high %v625, %v625
    %v629 = vunpack.c.l.s4 1966171168
    %v630 = vunpack.c.0.s8 %v629
    %v631 = vlaneseq
    %v632 = vshrl.u32 %v631, 7
    %v633 = vsub.s32 %v630, %v632
    %v634 = vrot.slane %v625, %v633
    %v636 = vunpack.c.l.s4 1966171168
    %v637 = vunpack.c.0.s8 %v636
    %v638 = vlaneseq
    %v639 = vshrl.u32 %v638, 7
    %v640 = vsub.s32 %v637, %v639
    %v641 = vrot.slane %v627, %v640
    %v642 = vcombine.high %v634, %v634
    %v643 = vcombine.high %v641, %v641
    %v645 = vunpack.c.l.s4 1966171168
    %v646 = vunpack.c.0.s8 %v645
    %v647 = vlaneseq
    %v648 = vshrl.u32 %v647, 7
    %v649 = vsub.s32 %v646, %v648
    %v650 = vrot.slane %v634, %v649
    %v652 = vunpack.c.l.s4 1966171168
    %v653 = vunpack.c.0.s8 %v652
    %v654 = vlaneseq
    %v655 = vshrl.u32 %v654, 7
    %v656 = vsub.s32 %v653, %v655
    %v657 = vrot.slane %v641, %v656
    %v659 = vunpack.c.l.s4 1966171168
    %v660 = vunpack.c.0.s8 %v659
    %v661 = vlaneseq
    %v662 = vshrl.u32 %v661, 7
    %v663 = vsub.s32 %v660, %v662
    %v664 = vrot.slane %v642, %v663
    %v666 = vunpack.c.l.s4 1966171168
    %v667 = vunpack.c.0.s8 %v666
    %v668 = vlaneseq
    %v669 = vshrl.u32 %v668, 7
    %v670 = vsub.s32 %v667, %v669
    %v671 = vrot.slane %v643, %v670
    %v672 = vcombine.high %v650, %v650
    %v673 = vcombine.high %v657, %v657
    %v674 = vcombine.high %v664, %v664
    %v675 = vcombine.high %v671, %v671
    %v676 = vlaneseq
    %v677 = vshrl.u32 %v676, 7
    %v678 = vsub.s32 0, %v677
    %v679 = vrot.slane %v650, %v678
    %v680 = vlaneseq
    %v681 = vshrl.u32 %v680, 7
    %v682 = vsub.s32 0, %v681
    %v683 = vrot.slane %v664, %v682
    %v684 = vlaneseq
    %v685 = vshrl.u32 %v684, 7
    %v686 = vsub.s32 0, %v685
    %v687 = vrot.slane %v672, %v686
    %v688 = vlaneseq
    %v689 = vshrl.u32 %v688, 7
    %v690 = vsub.s32 0, %v689
    %v691 = vrot.slane %v674, %v690
    %v692 = vlaneseq
    %v693 = vshrl.u32 %v692, 7
    %v694 = vsub.s32 0, %v693
    %v695 = vrot.slane %v657, %v694
    %v696 = vlaneseq
    %v697 = vshrl.u32 %v696, 7
    %v698 = vsub.s32 0, %v697
    %v699 = vrot.slane %v671, %v698
    %v700 = vlaneseq
    %v701 = vshrl.u32 %v700, 7
    %v702 = vsub.s32 0, %v701
    %v703 = vrot.slane %v673, %v702
    %v704 = vlaneseq
    %v705 = vshrl.u32 %v704, 7
    %v706 = vsub.s32 0, %v705
    %v707 = vrot.slane %v675, %v706
    %v716 = vmul.f32 %v562, %v679
    %v717 = vmul.f32 %v564, %v679
    %v718 = vmul.f32 %v566, %v679
    %v719 = vmul.f32 %v568, %v679
    %v720 = vmul.f32 %v570, %v683
    %v721 = vmul.f32 %v572, %v683
    %v722 = vmul.f32 %v574, %v683
    %v723 = vmul.f32 %v576, %v683
    %v724 = vmul.f32 %v578, %v687
    %v725 = vmul.f32 %v580, %v687
    %v726 = vmul.f32 %v582, %v687
    %v727 = vmul.f32 %v584, %v687
    %v728 = vmul.f32 %v586, %v691
    %v729 = vmul.f32 %v588, %v691
    %v730 = vmul.f32 %v590, %v691
    %v731 = vmul.f32 %v592, %v691
    %v732 = vmul.f32 %v594, %v695
    %v733 = vmul.f32 %v596, %v695
    %v734 = vmul.f32 %v598, %v695
    %v735 = vmul.f32 %v600, %v695
    %v736 = vmul.f32 %v602, %v699
    %v737 = vmul.f32 %v604, %v699
    %v738 = vmul.f32 %v606, %v699
    %v739 = vmul.f32 %v608, %v699
    %v740 = vmul.f32 %v610, %v703
    %v741 = vmul.f32 %v612, %v703
    %v742 = vmul.f32 %v614, %v703
    %v743 = vmul.f32 %v616, %v703
    %v744 = vmul.f32 %v618, %v707
    %v745 = vmul.f32 %v620, %v707
    %v746 = vmul.f32 %v622, %v707
    %v747 = vmul.f32 %v624, %v707
    %v748 = vld [vmem:[#allocation2] sm:$0xff]
    %749 = vadd.xlane.f32.xlu0 %v716
    %v750 = vpop.xlane.xlu0 %749
    %751 = vadd.xlane.f32.xlu0 %v717
    %v752 = vpop.xlane.xlu0 %751
    %753 = vadd.xlane.f32.xlu0 %v718
    %v754 = vpop.xlane.xlu0 %753
    %755 = vadd.xlane.f32.xlu0 %v719
    %v756 = vpop.xlane.xlu0 %755
    %757 = vadd.xlane.f32.xlu0 %v720
    %v758 = vpop.xlane.xlu0 %757
    %759 = vadd.xlane.f32.xlu0 %v721
    %v760 = vpop.xlane.xlu0 %759
    %761 = vadd.xlane.f32.xlu0 %v722
    %v762 = vpop.xlane.xlu0 %761
    %763 = vadd.xlane.f32.xlu0 %v723
    %v764 = vpop.xlane.xlu0 %763
    %765 = vadd.xlane.f32.xlu0 %v724
    %v766 = vpop.xlane.xlu0 %765
    %767 = vadd.xlane.f32.xlu0 %v725
    %v768 = vpop.xlane.xlu0 %767
    %769 = vadd.xlane.f32.xlu0 %v726
    %v770 = vpop.xlane.xlu0 %769
    %771 = vadd.xlane.f32.xlu0 %v727
    %v772 = vpop.xlane.xlu0 %771
    %773 = vadd.xlane.f32.xlu0 %v728
    %v774 = vpop.xlane.xlu0 %773
    %775 = vadd.xlane.f32.xlu0 %v729
    %v776 = vpop.xlane.xlu0 %775
    %777 = vadd.xlane.f32.xlu0 %v730
    %v778 = vpop.xlane.xlu0 %777
    %779 = vadd.xlane.f32.xlu0 %v731
    %v780 = vpop.xlane.xlu0 %779
    %781 = vadd.xlane.f32.xlu0 %v732
    %v782 = vpop.xlane.xlu0 %781
    %783 = vadd.xlane.f32.xlu0 %v733
    %v784 = vpop.xlane.xlu0 %783
    %785 = vadd.xlane.f32.xlu0 %v734
    %v786 = vpop.xlane.xlu0 %785
    %787 = vadd.xlane.f32.xlu0 %v735
    %v788 = vpop.xlane.xlu0 %787
    %789 = vadd.xlane.f32.xlu0 %v736
    %v790 = vpop.xlane.xlu0 %789
    %791 = vadd.xlane.f32.xlu0 %v737
    %v792 = vpop.xlane.xlu0 %791
    %793 = vadd.xlane.f32.xlu0 %v738
    %v794 = vpop.xlane.xlu0 %793
    %795 = vadd.xlane.f32.xlu0 %v739
    %v796 = vpop.xlane.xlu0 %795
    %797 = vadd.xlane.f32.xlu0 %v740
    %v798 = vpop.xlane.xlu0 %797
    %799 = vadd.xlane.f32.xlu0 %v741
    %v800 = vpop.xlane.xlu0 %799
    %801 = vadd.xlane.f32.xlu0 %v742
    %v802 = vpop.xlane.xlu0 %801
    %803 = vadd.xlane.f32.xlu0 %v743
    %v804 = vpop.xlane.xlu0 %803
    %805 = vadd.xlane.f32.xlu0 %v744
    %v806 = vpop.xlane.xlu0 %805
    %807 = vadd.xlane.f32.xlu0 %v745
    %v808 = vpop.xlane.xlu0 %807
    %809 = vadd.xlane.f32.xlu0 %v746
    %v810 = vpop.xlane.xlu0 %809
    %811 = vadd.xlane.f32.xlu0 %v747
    %v812 = vpop.xlane.xlu0 %811
    %v845 = vlaneseq
    %v846 = vand.u32 %v845, 127
    %v847 = vlaneseq
    %v848 = vshrl.u32 %v847, 7
    %v849 = vsub.s32 %v846, %v848
    %v850 = vrot.slane %v750, %v849
    %v851 = vadd.s32 %v846, 4294967288
    %v852 = vlaneseq
    %v853 = vshrl.u32 %v852, 7
    %v854 = vsub.s32 %v851, %v853
    %v855 = vrot.slane %v752, %v854
    %vm856 = vcmask 130112
    %v857 = vsel %vm856, %v855, %v850
    %v858 = vadd.s32 %v846, 4294967280
    %v859 = vlaneseq
    %v860 = vshrl.u32 %v859, 7
    %v861 = vsub.s32 %v858, %v860
    %v862 = vrot.slane %v754, %v861
    %vm863 = vcmask 195712
    %v864 = vsel %vm863, %v862, %v857
    %v865 = vadd.s32 %v846, 4294967272
    %v866 = vlaneseq
    %v867 = vshrl.u32 %v866, 7
    %v868 = vsub.s32 %v865, %v867
    %v869 = vrot.slane %v756, %v868
    %vm870 = vcmask 261312
    %v871 = vsel %vm870, %v869, %v864
    %v872 = vlaneseq
    %v873 = vshrl.u32 %v872, 7
    %v874 = vsub.s32 %v846, %v873
    %v875 = vrot.slane %v758, %v874
    %v876 = vlaneseq
    %v877 = vshrl.u32 %v876, 7
    %v878 = vsub.s32 %v851, %v877
    %v879 = vrot.slane %v760, %v878
    %v880 = vsel %vm856, %v879, %v875
    %v881 = vlaneseq
    %v882 = vshrl.u32 %v881, 7
    %v883 = vsub.s32 %v858, %v882
    %v884 = vrot.slane %v762, %v883
    %v885 = vsel %vm863, %v884, %v880
    %v886 = vlaneseq
    %v887 = vshrl.u32 %v886, 7
    %v888 = vsub.s32 %v865, %v887
    %v889 = vrot.slane %v764, %v888
    %v890 = vsel %vm870, %v889, %v885
    %v891 = vlaneseq
    %v892 = vshrl.u32 %v891, 7
    %v893 = vsub.s32 %v846, %v892
    %v894 = vrot.slane %v766, %v893
    %v895 = vlaneseq
    %v896 = vshrl.u32 %v895, 7
    %v897 = vsub.s32 %v851, %v896
    %v898 = vrot.slane %v768, %v897
    %v899 = vsel %vm856, %v898, %v894
    %v900 = vlaneseq
    %v901 = vshrl.u32 %v900, 7
    %v902 = vsub.s32 %v858, %v901
    %v903 = vrot.slane %v770, %v902
    %v904 = vsel %vm863, %v903, %v899
    %v905 = vlaneseq
    %v906 = vshrl.u32 %v905, 7
    %v907 = vsub.s32 %v865, %v906
    %v908 = vrot.slane %v772, %v907
    %v909 = vsel %vm870, %v908, %v904
    %v910 = vlaneseq
    %v911 = vshrl.u32 %v910, 7
    %v912 = vsub.s32 %v846, %v911
    %v913 = vrot.slane %v774, %v912
    %v914 = vlaneseq
    %v915 = vshrl.u32 %v914, 7
    %v916 = vsub.s32 %v851, %v915
    %v917 = vrot.slane %v776, %v916
    %v918 = vsel %vm856, %v917, %v913
    %v919 = vlaneseq
    %v920 = vshrl.u32 %v919, 7
    %v921 = vsub.s32 %v858, %v920
    %v922 = vrot.slane %v778, %v921
    %v923 = vsel %vm863, %v922, %v918
    %v924 = vlaneseq
    %v925 = vshrl.u32 %v924, 7
    %v926 = vsub.s32 %v865, %v925
    %v927 = vrot.slane %v780, %v926
    %v928 = vsel %vm870, %v927, %v923
    %v929 = vlaneseq
    %v930 = vshrl.u32 %v929, 7
    %v931 = vsub.s32 %v846, %v930
    %v932 = vrot.slane %v782, %v931
    %v933 = vlaneseq
    %v934 = vshrl.u32 %v933, 7
    %v935 = vsub.s32 %v851, %v934
    %v936 = vrot.slane %v784, %v935
    %v937 = vsel %vm856, %v936, %v932
    %v938 = vlaneseq
    %v939 = vshrl.u32 %v938, 7
    %v940 = vsub.s32 %v858, %v939
    %v941 = vrot.slane %v786, %v940
    %v942 = vsel %vm863, %v941, %v937
    %v943 = vlaneseq
    %v944 = vshrl.u32 %v943, 7
    %v945 = vsub.s32 %v865, %v944
    %v946 = vrot.slane %v788, %v945
    %v947 = vsel %vm870, %v946, %v942
    %v948 = vlaneseq
    %v949 = vshrl.u32 %v948, 7
    %v950 = vsub.s32 %v846, %v949
    %v951 = vrot.slane %v790, %v950
    %v952 = vlaneseq
    %v953 = vshrl.u32 %v952, 7
    %v954 = vsub.s32 %v851, %v953
    %v955 = vrot.slane %v792, %v954
    %v956 = vsel %vm856, %v955, %v951
    %v957 = vlaneseq
    %v958 = vshrl.u32 %v957, 7
    %v959 = vsub.s32 %v858, %v958
    %v960 = vrot.slane %v794, %v959
    %v961 = vsel %vm863, %v960, %v956
    %v962 = vlaneseq
    %v963 = vshrl.u32 %v962, 7
    %v964 = vsub.s32 %v865, %v963
    %v965 = vrot.slane %v796, %v964
    %v966 = vsel %vm870, %v965, %v961
    %v967 = vlaneseq
    %v968 = vshrl.u32 %v967, 7
    %v969 = vsub.s32 %v846, %v968
    %v970 = vrot.slane %v798, %v969
    %v971 = vlaneseq
    %v972 = vshrl.u32 %v971, 7
    %v973 = vsub.s32 %v851, %v972
    %v974 = vrot.slane %v800, %v973
    %v975 = vsel %vm856, %v974, %v970
    %v976 = vlaneseq
    %v977 = vshrl.u32 %v976, 7
    %v978 = vsub.s32 %v858, %v977
    %v979 = vrot.slane %v802, %v978
    %v980 = vsel %vm863, %v979, %v975
    %v981 = vlaneseq
    %v982 = vshrl.u32 %v981, 7
    %v983 = vsub.s32 %v865, %v982
    %v984 = vrot.slane %v804, %v983
    %v985 = vsel %vm870, %v984, %v980
    %v986 = vlaneseq
    %v987 = vshrl.u32 %v986, 7
    %v988 = vsub.s32 %v846, %v987
    %v989 = vrot.slane %v806, %v988
    %v990 = vlaneseq
    %v991 = vshrl.u32 %v990, 7
    %v992 = vsub.s32 %v851, %v991
    %v993 = vrot.slane %v808, %v992
    %v994 = vsel %vm856, %v993, %v989
    %v995 = vlaneseq
    %v996 = vshrl.u32 %v995, 7
    %v997 = vsub.s32 %v858, %v996
    %v998 = vrot.slane %v810, %v997
    %v999 = vsel %vm863, %v998, %v994
    %v1000 = vlaneseq
    %v1001 = vshrl.u32 %v1000, 7
    %v1002 = vsub.s32 %v865, %v1001
    %v1003 = vrot.slane %v812, %v1002
    %v1004 = vsel %vm870, %v1003, %v999
    %vm1005 = vcmask 1041409
    %v1006 = vsel %vm1005, %v890, %v871
    %vm1007 = vcmask 1042434
    %v1008 = vsel %vm1007, %v909, %v1006
    %vm1009 = vcmask 1043459
    %v1010 = vsel %vm1009, %v928, %v1008
    %vm1011 = vcmask 1044484
    %v1012 = vsel %vm1011, %v947, %v1010
    %vm1013 = vcmask 1045509
    %v1014 = vsel %vm1013, %v966, %v1012
    %vm1015 = vcmask 1046534
    %v1016 = vsel %vm1015, %v985, %v1014
    %vm1017 = vcmask 1047559
    %v1018 = vsel %vm1017, %v1004, %v1016
    %v1020 = vadd.f32 %v748, %v1018
    %vm1021 = vcmask 261120
    %1022 = vst.msk [vmem:[#allocation2] sm:$0xff] %vm1021, %v1020
    // Predicated region
    $region22: #{tpu_custom_call.1} parent=1 // pred_check
      _
    $region23: #{tpu_custom_call.1} parent=1 // pred_check_branch
      %1024 = sbr.rel (0) target = $region25
    $region24: #{tpu_custom_call.1} parent=1 // pred_region
      %s1026 = ssub.s32 128, 128
      %1027 = vsyncadd [#allocation3], %s1026
      %s1029 = sshll.u32 [#allocation2], 4
      %s1030 = int_to_ptr.vmem [resolvable:$true] %s1029
      %1032 = dma.vmem_to_hbm [thread:$0]  %s1030, 128, %s4, [#allocation3]
    $region25: #{tpu_custom_call.1} parent=1 // pred_fallthru
      _
    // Predicated region
    $region26: #{tpu_custom_call.1} parent=1 // pred_check
      _
    $region27: #{tpu_custom_call.1} parent=1 // pred_check_branch
      %1034 = sbr.rel (0) target = $region29
    $region28: #{tpu_custom_call.1} parent=1 // pred_region
      %1035 = dma.done [#allocation3], 128
    $region29: #{tpu_custom_call.1} parent=1 // pred_fallthru
      _
    %1036 = vsyncpa [#allocation3], 1

</llo_original>
